<compile_context>
chip_gen: v7x
topology: tpu7x:2x2x1
jax: 0.10.0
libtpu: 0.0.40
codegen_flags: <defaults>
</compile_context>

<pallas_src>
import functools

import jax
import jax.numpy as jnp
import numpy as np
from jax.experimental import pallas as pl
from jax.experimental.pallas import tpu as pltpu


def _round_up(x, m):
    return ((x + m - 1) // m) * m


def _oce_kernel(theta_ref, logits_ref, tgt_ref, out_ref, acc_ref, *, mode):
    """Per-block: per-sample CE -> hinge -> elementwise accumulate; final reduce.

    theta_ref  : SMEM (1,)     f32   -- OCE dual variable
    logits_ref : VMEM (bn, C)  f32/bf16
    tgt_ref    : VMEM (bn, 1)  i32   -- class index, -1 marks padded rows
    out_ref    : VMEM (8, 128) f32   -- per-slice partial sum (written once)
    acc_ref    : VMEM (bn, 1)  f32   -- per-row running accumulator (scratch)
    """
    i = pl.program_id(1)

    @pl.when(i == 0)
    def _():
        acc_ref[...] = jnp.zeros_like(acc_ref)

    x = logits_ref[...].astype(jnp.float32)            # (bn, C)
    t = tgt_ref[...]                                    # (bn, 1) int32

    # target logit via iota compare (no one-hot materialized in HBM)
    col = jax.lax.broadcasted_iota(jnp.int32, x.shape, 1)
    tgt_logit = jnp.sum(jnp.where(col == t, x, 0.0), axis=-1, keepdims=True)

    # CrossEntropyLoss(reduction='none'):  loss_i = logsumexp(x_i) - x_i[y_i]
    m = jnp.max(x, axis=-1, keepdims=True)
    lse = m + jnp.log(jnp.sum(jnp.exp(x - m), axis=-1, keepdims=True))
    loss = lse - tgt_logit                              # (bn, 1)

    if mode == "mean":                                  # qlevel == 0 / radius == 0
        contrib = loss
    else:
        theta = theta_ref[0]
        h = jnp.maximum(loss - theta, 0.0)
        contrib = h if mode == "cvar" else h * h        # "dro": relu(.)^2

    valid = t >= 0                                      # mask padded rows
    acc_ref[...] += jnp.where(valid, contrib, 0.0)

    # single reduce + single (lane-dense) write per slice, at the last step
    @pl.when(i == pl.num_programs(1) - 1)
    def _():
        total = jnp.sum(acc_ref[...])
        lane = jax.lax.broadcasted_iota(jnp.int32, (8, 128), 1)
        sub = jax.lax.broadcasted_iota(jnp.int32, (8, 128), 0)
        out_ref[...] = jnp.where((lane == 0) & (sub == 0), total, 0.0)


def loss_oce_like(logits, targets, *, crit_name, crit_paras, theta_init=0.0,
                  num_slices=2, max_block_n=2048):
    """Forward pass of Loss_OCElike with loss_name='CrossEntropy'."""
    N, C = logits.shape

    if crit_name == "CVaR":
        qlevel = float(crit_paras["quantile_level"])
        if qlevel < 0.0:
            raise ValueError("CVaR only works for non-negative qlevel.")
        mode = "mean" if qlevel == 0.0 else "cvar"
    elif crit_name == "DRO":
        radius = float(crit_paras["radius"])
        if radius < 0.0:
            raise ValueError("DRO only works for non-negative radius.")
        mode = "mean" if radius == 0.0 else "dro"
    else:
        raise ValueError("Please pass a recognized criterion name.")

    # ---- tiling: pick the largest block that comfortably fits scoped VMEM ----
    itemsize = jnp.dtype(logits.dtype).itemsize
    sub_mult = max(8, 32 // itemsize)            # f32 -> 8, bf16 -> 16, 8-bit -> 32
    tile_budget = 10 * 1024 * 1024               # double-buffered logits tiles
    bn_cap = max(sub_mult, tile_budget // (2 * C * itemsize))

    rows_per_slice = -(-N // num_slices)
    bn = min(max_block_n, bn_cap, max(rows_per_slice, 1))
    bn = _round_up(bn, sub_mult)
    steps = -(-rows_per_slice // bn)
    n_pad = num_slices * steps * bn

    targets2d = targets.astype(jnp.int32).reshape(N, 1)
    if n_pad != N:
        logits = jnp.pad(logits, ((0, n_pad - N), (0, 0)))
        targets2d = jnp.pad(targets2d, ((0, n_pad - N), (0, 0)),
                            constant_values=-1)   # -1 => masked in kernel

    theta_arr = jnp.asarray([theta_init], dtype=jnp.float32)
    kern = functools.partial(_oce_kernel, mode=mode)

    partials = pl.pallas_call(
        kern,
        out_shape=jax.ShapeDtypeStruct((num_slices * 8, 128), jnp.float32),
        grid=(num_slices, steps),
        in_specs=[
            pl.BlockSpec(memory_space=pltpu.SMEM),                       # theta
            pl.BlockSpec((bn, C), lambda c, i: (c * steps + i, 0)),      # logits
            pl.BlockSpec((bn, 1), lambda c, i: (c * steps + i, 0)),      # targets
        ],
        out_specs=pl.BlockSpec((8, 128), lambda c, i: (c, 0)),           # per-slice sum
        scratch_shapes=[pltpu.VMEM((bn, 1), jnp.float32)],
        compiler_params=pltpu.CompilerParams(
            dimension_semantics=("parallel", "arbitrary"),
            vmem_limit_bytes=32 * 1024 * 1024),
    )(theta_arr, logits, targets2d)

    total = jnp.sum(partials)          # only [c*8, 0] entries are nonzero
    mean_val = total / N

    if mode == "mean":
        return mean_val
    elif mode == "cvar":
        qlevel = float(crit_paras["quantile_level"])
        return theta_init + mean_val / (1.0 - qlevel)
    else:  # dro
        radius = float(crit_paras["radius"])
        return theta_init + jnp.sqrt((1.0 + 2.0 * radius) * mean_val)


def _reference(logits, targets, *, crit_name, crit_paras, theta_init=0.0):
    """Pure-JAX reference mirroring the PyTorch forward."""
    lse = jax.nn.logsumexp(logits.astype(jnp.float32), axis=-1)
    tgt = jnp.take_along_axis(logits.astype(jnp.float32),
                              targets[:, None], axis=-1)[:, 0]
    loss = lse - tgt
    if crit_name == "CVaR":
        q = float(crit_paras["quantile_level"])
        if q == 0.0:
            return loss.mean()
        return theta_init + jnp.maximum(loss - theta_init, 0.0).mean() / (1.0 - q)
    else:  # DRO
        r = float(crit_paras["radius"])
        if r == 0.0:
            return loss.mean()
        sqd = (1.0 + 2.0 * r) * (jnp.maximum(loss - theta_init, 0.0) ** 2).mean()
        return theta_init + jnp.sqrt(sqd)


if __name__ == "__main__":
    key = jax.random.PRNGKey(0)
    k_logits, k_tgt = jax.random.split(key)

    # N deliberately NOT a multiple of the tile size to exercise pad + mask.
    N, C = 100, 32
    logits = jax.random.normal(k_logits, (N, C), dtype=jnp.float32)
    targets = jax.random.randint(k_tgt, (N,), 0, C, dtype=jnp.int32)
    theta_init = 0.0

    # CVaR, quantile_level > 0
    cvar_paras = {"quantile_level": 0.25}
    out_cvar = jax.block_until_ready(
        loss_oce_like(logits, targets, crit_name="CVaR",
                      crit_paras=cvar_paras, theta_init=theta_init))
    ref_cvar = _reference(logits, targets, crit_name="CVaR",
                          crit_paras=cvar_paras, theta_init=theta_init)

    # DRO, radius > 0
    dro_paras = {"radius": 0.1}
    out_dro = jax.block_until_ready(
        loss_oce_like(logits, targets, crit_name="DRO",
                      crit_paras=dro_paras, theta_init=theta_init))
    ref_dro = _reference(logits, targets, crit_name="DRO",
                         crit_paras=dro_paras, theta_init=theta_init)

    # CVaR with quantile_level == 0 (plain mean path)
    mean_paras = {"quantile_level": 0.0}
    out_mean = jax.block_until_ready(
        loss_oce_like(logits, targets, crit_name="CVaR",
                      crit_paras=mean_paras, theta_init=theta_init))
    ref_mean = _reference(logits, targets, crit_name="CVaR",
                          crit_paras=mean_paras, theta_init=theta_init)

    assert np.allclose(np.asarray(out_cvar), np.asarray(ref_cvar),
                       rtol=1e-5, atol=1e-5), (out_cvar, ref_cvar)
    assert np.allclose(np.asarray(out_dro), np.asarray(ref_dro),
                       rtol=1e-5, atol=1e-5), (out_dro, ref_dro)
    assert np.allclose(np.asarray(out_mean), np.asarray(ref_mean),
                       rtol=1e-5, atol=1e-5), (out_mean, ref_mean)

    print("KERNEL_OK")
</pallas_src>

<mosaic_0001>
module attributes {stable_mosaic.version = 11 : i64} {
  func.func @_oce_kernel(%arg0: i32, %arg1: i32, %arg2: memref<1xf32, #tpu.memory_space<smem>>, %arg3: memref<56x32xf32, #tpu.memory_space<vmem>>, %arg4: memref<56x1xi32, #tpu.memory_space<vmem>>, %arg5: memref<8x128xf32, #tpu.memory_space<vmem>>, %arg6: memref<56x1xf32, #tpu.memory_space<vmem>>) attributes {dimension_semantics = [#tpu.dimension_semantics<parallel>, #tpu.dimension_semantics<arbitrary>], iteration_bounds = array<i64: 2, 1>, scalar_prefetch = 0 : i64, scratch_operands = 1 : i64, tpu.core_type = #tpu.core_type<tc>, window_params = [{transform_indices = @transform_0, window_bounds = array<i64: 1>}, {transform_indices = @transform_1, window_bounds = array<i64: 56, 32>}, {transform_indices = @transform_2, window_bounds = array<i64: 56, 1>}, {transform_indices = @transform_3, window_bounds = array<i64: 8, 128>}]} {
    %c0_i32 = arith.constant 0 : i32
    %0 = arith.cmpi eq, %arg1, %c0_i32 : i32
    %1 = arith.extui %0 : i1 to i32
    %c0_i32_0 = arith.constant 0 : i32
    %2 = arith.cmpi ne, %1, %c0_i32_0 : i32
    scf.if %2 {
      %cst_17 = arith.constant 0.000000e+00 : f32
      %37 = vector.broadcast %cst_17 : f32 to vector<56x1xf32>
      %c0_18 = arith.constant 0 : index
      %c0_19 = arith.constant 0 : index
      %38 = vector.load %arg6[%c0_18, %c0_19] : memref<56x1xf32, #tpu.memory_space<vmem>>, vector<56x1xf32>
      tpu.vector_store %arg6[%c0_18, %c0_19], %37 {strides = array<i32>} : memref<56x1xf32, #tpu.memory_space<vmem>>, vector<56x1xf32>,
    } else {
    }
    %c0 = arith.constant 0 : index
    %c0_1 = arith.constant 0 : index
    %3 = vector.load %arg3[%c0, %c0_1] : memref<56x32xf32, #tpu.memory_space<vmem>>, vector<56x32xf32>
    %c0_2 = arith.constant 0 : index
    %c0_3 = arith.constant 0 : index
    %4 = vector.load %arg4[%c0_2, %c0_3] : memref<56x1xi32, #tpu.memory_space<vmem>>, vector<56x1xi32>
    %5 = tpu.iota {dimensions = array<i32: 1>} : vector<56x32xi32>
    %6 = vector.broadcast %4 : vector<56x1xi32> to vector<56x32xi32>
    %7 = arith.cmpi eq, %5, %6 : vector<56x32xi32>
    %cst = arith.constant 0.000000e+00 : f32
    %8 = vector.broadcast %cst : f32 to vector<56x32xf32>
    %9 = arith.select %7, %3, %8 : vector<56x32xi1>, vector<56x32xf32>
    %cst_4 = arith.constant dense<0.000000e+00> : vector<56xf32>
    %10 = vector.multi_reduction <add>, %9, %cst_4 [1] : vector<56x32xf32> to vector<56xf32>
    %11 = vector.shape_cast %10 : vector<56xf32> to vector<56x1xf32>
    %cst_5 = arith.constant dense<0xFF800000> : vector<56xf32>
    %12 = vector.multi_reduction <maximumf>, %3, %cst_5 [1] : vector<56x32xf32> to vector<56xf32>
    %13 = vector.shape_cast %12 : vector<56xf32> to vector<56x1xf32>
    %14 = vector.broadcast %13 : vector<56x1xf32> to vector<56x32xf32>
    %15 = arith.subf %3, %14 : vector<56x32xf32>
    %16 = math.exp %15 : vector<56x32xf32>
    %cst_6 = arith.constant dense<0.000000e+00> : vector<56xf32>
    %17 = vector.multi_reduction <add>, %16, %cst_6 [1] : vector<56x32xf32> to vector<56xf32>
    %18 = vector.shape_cast %17 : vector<56xf32> to vector<56x1xf32>
    %19 = math.log %18 : vector<56x1xf32>
    %20 = arith.addf %13, %19 : vector<56x1xf32>
    %21 = arith.subf %20, %11 : vector<56x1xf32>
    %c0_7 = arith.constant 0 : index
    %22 = memref.load %arg2[%c0_7] : memref<1xf32, #tpu.memory_space<smem>>
    %23 = vector.broadcast %22 : f32 to vector<56x1xf32>
    %24 = arith.subf %21, %23 : vector<56x1xf32>
    %cst_8 = arith.constant 0.000000e+00 : f32
    %25 = vector.broadcast %cst_8 : f32 to vector<56x1xf32>
    %26 = arith.maximumf %24, %25 : vector<56x1xf32>
    %c0_i32_9 = arith.constant 0 : i32
    %27 = vector.broadcast %c0_i32_9 : i32 to vector<56x1xi32>
    %28 = arith.cmpi sge, %4, %27 : vector<56x1xi32>
    %c0_10 = arith.constant 0 : index
    %c0_11 = arith.constant 0 : index
    %29 = vector.load %arg6[%c0_10, %c0_11] : memref<56x1xf32, #tpu.memory_space<vmem>>, vector<56x1xf32>
    %cst_12 = arith.constant 0.000000e+00 : f32
    %30 = vector.broadcast %cst_12 : f32 to vector<56x1xf32>
    %31 = arith.select %28, %26, %30 : vector<56x1xi1>, vector<56x1xf32>
    %32 = arith.addf %29, %31 : vector<56x1xf32>
    %c0_13 = arith.constant 0 : index
    %c0_14 = arith.constant 0 : index
    %33 = vector.load %arg6[%c0_13, %c0_14] : memref<56x1xf32, #tpu.memory_space<vmem>>, vector<56x1xf32>
    tpu.vector_store %arg6[%c0_13, %c0_14], %32 {strides = array<i32>} : memref<56x1xf32, #tpu.memory_space<vmem>>, vector<56x1xf32>,
    %c0_i32_15 = arith.constant 0 : i32
    %34 = arith.cmpi eq, %arg1, %c0_i32_15 : i32
    %35 = arith.extui %34 : i1 to i32
    %c0_i32_16 = arith.constant 0 : i32
    %36 = arith.cmpi ne, %35, %c0_i32_16 : i32
    scf.if %36 {
      %c0_17 = arith.constant 0 : index
      %c0_18 = arith.constant 0 : index
      %37 = vector.load %arg6[%c0_17, %c0_18] : memref<56x1xf32, #tpu.memory_space<vmem>>, vector<56x1xf32>
      %38 = vector.shape_cast %37 : vector<56x1xf32> to vector<1x56x1xf32>
      %cst_19 = arith.constant dense<0.000000e+00> : vector<1xf32>
      %39 = vector.multi_reduction <add>, %38, %cst_19 [1, 2] : vector<1x56x1xf32> to vector<1xf32>
      %40 = vector.shape_cast %39 : vector<1xf32> to vector<1x1x1xf32>
      %41 = vector.extract %40[0, 0, 0] : f32 from vector<1x1x1xf32>
      %42 = tpu.iota {dimensions = array<i32: 1>} : vector<8x128xi32>
      %43 = tpu.iota {dimensions = array<i32: 0>} : vector<8x128xi32>
      %c0_i32_20 = arith.constant 0 : i32
      %44 = vector.broadcast %c0_i32_20 : i32 to vector<8x128xi32>
      %45 = arith.cmpi eq, %42, %44 : vector<8x128xi32>
      %c0_i32_21 = arith.constant 0 : i32
      %46 = vector.broadcast %c0_i32_21 : i32 to vector<8x128xi32>
      %47 = arith.cmpi eq, %43, %46 : vector<8x128xi32>
      %48 = arith.andi %45, %47 : vector<8x128xi1>
      %cst_22 = arith.constant 0.000000e+00 : f32
      %49 = vector.broadcast %41 : f32 to vector<8x128xf32>
      %50 = vector.broadcast %cst_22 : f32 to vector<8x128xf32>
      %51 = arith.select %48, %49, %50 : vector<8x128xi1>, vector<8x128xf32>
      %c0_23 = arith.constant 0 : index
      %c0_24 = arith.constant 0 : index
      %52 = vector.load %arg5[%c0_23, %c0_24] : memref<8x128xf32, #tpu.memory_space<vmem>>, vector<8x128xf32>
      tpu.vector_store %arg5[%c0_23, %c0_24], %51 {strides = array<i32>} : memref<8x128xf32, #tpu.memory_space<vmem>>, vector<8x128xf32>,
    } else {
    }
    return
  }
  func.func @transform_0(%arg0: i32, %arg1: i32) -> i32 {
    %c0_i32 = arith.constant 0 : i32
    %c0_i32_0 = arith.constant 0 : i32
    return %c0_i32 : i32
  }
  func.func @transform_1(%arg0: i32, %arg1: i32) -> (i32, i32) {
    %c1_i32 = arith.constant 1 : i32
    %0 = arith.muli %arg0, %c1_i32 : i32
    %1 = arith.addi %0, %arg1 : i32
    %c0_i32 = arith.constant 0 : i32
    %c0_i32_0 = arith.constant 0 : i32
    return %1, %c0_i32 : i32, i32
  }
  func.func @transform_2(%arg0: i32, %arg1: i32) -> (i32, i32) {
    %c1_i32 = arith.constant 1 : i32
    %0 = arith.muli %arg0, %c1_i32 : i32
    %1 = arith.addi %0, %arg1 : i32
    %c0_i32 = arith.constant 0 : i32
    %c0_i32_0 = arith.constant 0 : i32
    return %1, %c0_i32 : i32, i32
  }
  func.func @transform_3(%arg0: i32, %arg1: i32) -> (i32, i32) {
    %c0_i32 = arith.constant 0 : i32
    %c0_i32_0 = arith.constant 0 : i32
    return %arg0, %c0_i32 : i32, i32
  }
}

</mosaic_0001>

<llo_original>
// kernel: tpu_custom_call.1
$region0: #{tpu_custom_call.1}
  #allocation0 [shape = 'u32[]', space=smem, size = 0x4, offset = 0x4, fixed_abs, tag = 'smem constant byte address 0x4 - core index']
  #allocation1 [shape = 'u32[144,128]{1,0:T(1,128)}', space=vmem, size = 0x12000, scoped, tag = 'internal scratch']
  #allocation2 [shape = 'f32[56,1]{1,0:T(8,128)}', space=vmem, size = 0x7000, scoped, tag = 'scratch operand']
  #allocation3 [shape = 'f32[1]{0:T(128)S(6)}', space=smem, size = 0x200, scoped, tag = 'scoped memory for tpu_custom_call.1']
  %s0 = inlined_call_operand.<no memory space> [shape: f32[1], index: 0, kind: input, shape index: {}]
  %s1 = inlined_call_operand.vmem [shape: f32[112,32], index: 1, kind: input, shape index: {}]
  %s2 = inlined_call_operand.vmem [shape: s32[112,1], index: 2, kind: input, shape index: {}]
  %s3 = inlined_call_operand.hbm [shape: f32[16,128], index: 3, kind: output, shape index: {}]
  %s4 = sld [smem:[#allocation0]]
  $region53: #{tpu_custom_call.1} parent=0
    _
  %s6 = ssub.s32 1, %s4
  %s7 = scalar_select 0, %s6, %s4
  %8 = sst [smem:[#allocation3]] %s0
  $region1: #{tpu_custom_call.1} parent=0
    #allocation4 [shape = 'u8[8192]{0}', space=vmem, size = 0x2000, scoped, tag = 'output window, operand 0']
    #allocation5 [shape = 's32[2]{0}', space=sflag, size = 0x8, scoped, tag = 'scoped memory for tpu_custom_call.1']
    %9 = vsyncpa [#allocation5], 0
    %s10 = scalar_lea.sflag [#allocation5], 1
    %11 = vsyncpa %s10, 0
    loop: start=0, step=1, limit=4
    $region2: #{tpu_custom_call.1} parent=1 // loop_pre_header
      _
    $region3: #{tpu_custom_call.1} parent=1 // loop_header
      %s13 = sphi 0, %s17
      %p14 = scmp.ge.s32.totalorder %s13, 4
      %s20 = sphi 0, %s32
      %s21 = sphi 0, %s28
      %s22 = sphi 0, %s20
      %s23 = sphi 0, %s21
      %s24 = sphi 0, %s22
      %s25 = sphi 0, %s23
      %s33 = sphi 0, %s33
      %s35 = sphi 0, %s33
      %s36 = sphi 0, %s35
      %s50 = sphi 0, %s36
      %s58 = sphi 0, %s60
      %s61 = sphi 0, %s58
      %s62 = sphi 0, %s61
      %s78 = sphi 0, %s62
      %s86 = sphi 0, %s88
      %s89 = sphi 0, %s86
      %s90 = sphi 0, %s89
      %s106 = sphi 0, %s90
      %s112 = sphi 0, %s114
      %s115 = sphi 0, %s112
      %s116 = sphi 0, %s115
      %s132 = sphi 0, %s116
    $region4: #{tpu_custom_call.1} parent=1 // loop_header_branch
      %16 = sbr.rel (%p14) target = $region8
    $region5: #{tpu_custom_call.1} parent=1 // loop_body
      %s18 = ssub.s32 %s13, 1
      %s19 = ssub.s32 %s13, 2
      %s26 = sadd.s32 1, %s21
      %p27 = scmp.ge.s32.totalorder %s26, 1
      %s28 = scalar_select %p27, 0, %s26
      %s29 = sadd.s32 1, %s20
      %s30 = scalar_select %p27, %s29, %s20
      %p31 = scmp.ge.s32.totalorder %s30, 2
      %s32 = scalar_select %p31, 0, %s30
      %s34 = sadd.s32 %s33, 1
      %p37 = scmp.eq.s32.totalorder %s13, 1
      %p38 = scmp.ne.s32.totalorder %s33, %s35
      %p39 = scmp.eq.s32.totalorder %s13, 0
      %p40 = por %p38, %p39
      %p41 = scmp.ne.s32.totalorder %s33, %s35
      %p42 = scmp.eq.s32.totalorder %s18, 1
      %p43 = por %p41, %p42
      %p44 = scmp.ne.s32.totalorder %s35, %s36
      %p45 = scmp.eq.s32.totalorder %s18, 0
      %p46 = por %p44, %p45
      %p47 = scmp.ne.s32.totalorder %s35, %s36
      %p48 = scmp.eq.s32.totalorder %s19, 1
      %p49 = por %p47, %p48
      %p51 = scmp.ne.s32.totalorder %s36, %s50
      %p52 = scmp.eq.s32.totalorder %s19, 0
      %p53 = por %p51, %p52
      %s54 = sadd.s32 %s20, %s21
      %s55 = sadd.s32 %s32, %s28
      %s56 = ssub.s32 %s54, %s55
      %p57 = scmp.eq.s32.totalorder %s56, 0
      %s59 = sadd.s32 %s58, 1
      %s60 = scalar_select %p57, %s58, %s59
      %p63 = pneg %p57
      %p64 = scmp.eq.s32.totalorder %s13, 1
      %p65 = por %p63, %p64
      %p66 = scmp.ne.s32.totalorder %s58, %s61
      %p67 = scmp.eq.s32.totalorder %s13, 0
      %p68 = por %p66, %p67
      %p69 = scmp.ne.s32.totalorder %s58, %s61
      %p70 = scmp.eq.s32.totalorder %s18, 1
      %p71 = por %p69, %p70
      %p72 = scmp.ne.s32.totalorder %s61, %s62
      %p73 = scmp.eq.s32.totalorder %s18, 0
      %p74 = por %p72, %p73
      %p75 = scmp.ne.s32.totalorder %s61, %s62
      %p76 = scmp.eq.s32.totalorder %s19, 1
      %p77 = por %p75, %p76
      %p79 = scmp.ne.s32.totalorder %s62, %s78
      %p80 = scmp.eq.s32.totalorder %s19, 0
      %p81 = por %p79, %p80
      %s82 = sadd.s32 %s20, %s21
      %s83 = sadd.s32 %s32, %s28
      %s84 = ssub.s32 %s82, %s83
      %p85 = scmp.eq.s32.totalorder %s84, 0
      %s87 = sadd.s32 %s86, 1
      %s88 = scalar_select %p85, %s86, %s87
      %p91 = pneg %p85
      %p92 = scmp.eq.s32.totalorder %s13, 1
      %p93 = por %p91, %p92
      %p94 = scmp.ne.s32.totalorder %s86, %s89
      %p95 = scmp.eq.s32.totalorder %s13, 0
      %p96 = por %p94, %p95
      %p97 = scmp.ne.s32.totalorder %s86, %s89
      %p98 = scmp.eq.s32.totalorder %s18, 1
      %p99 = por %p97, %p98
      %p100 = scmp.ne.s32.totalorder %s89, %s90
      %p101 = scmp.eq.s32.totalorder %s18, 0
      %p102 = por %p100, %p101
      %p103 = scmp.ne.s32.totalorder %s89, %s90
      %p104 = scmp.eq.s32.totalorder %s19, 1
      %p105 = por %p103, %p104
      %p107 = scmp.ne.s32.totalorder %s90, %s106
      %p108 = scmp.eq.s32.totalorder %s19, 0
      %p109 = por %p107, %p108
      %s110 = ssub.s32 %s20, %s32
      %p111 = scmp.eq.s32.totalorder %s110, 0
      %s113 = sadd.s32 %s112, 1
      %s114 = scalar_select %p111, %s112, %s113
      %p117 = pneg %p111
      %p118 = scmp.eq.s32.totalorder %s13, 1
      %p119 = por %p117, %p118
      %p120 = scmp.ne.s32.totalorder %s112, %s115
      %p121 = scmp.eq.s32.totalorder %s13, 0
      %p122 = por %p120, %p121
      %p123 = scmp.ne.s32.totalorder %s112, %s115
      %p124 = scmp.eq.s32.totalorder %s18, 1
      %p125 = por %p123, %p124
      %p126 = scmp.ne.s32.totalorder %s115, %s116
      %p127 = scmp.eq.s32.totalorder %s18, 0
      %p128 = por %p126, %p127
      %p129 = scmp.ne.s32.totalorder %s115, %s116
      %p130 = scmp.eq.s32.totalorder %s19, 1
      %p131 = por %p129, %p130
      %p133 = scmp.ne.s32.totalorder %s116, %s132
      %p134 = scmp.eq.s32.totalorder %s19, 0
      %p135 = por %p133, %p134
      %p136 = scmp.le.s32.totalorder 1, %s13
      %p137 = scmp.lt.s32.totalorder %s13, 3
      %p138 = pnand %p136, %p137
      %p139 = pneg %p138
      // Predicated region
      $region9: #{tpu_custom_call.1} parent=5 // pred_check
        _
      $region10: #{tpu_custom_call.1} parent=5 // pred_check_branch
        %141 = sbr.rel (%p138) target = $region12
      $region11: #{tpu_custom_call.1} parent=5 // pred_region
        %s142 = ssub.s32 %s13, 1
        // Predicated region
        $region13: #{tpu_custom_call.1} parent=11 // pred_check
          %p143 = pneg %p46
        $region14: #{tpu_custom_call.1} parent=11 // pred_check_branch
          %145 = sbr.rel (%p143) target = $region16
        $region15: #{tpu_custom_call.1} parent=11 // pred_region
          _
        $region16: #{tpu_custom_call.1} parent=11 // pred_fallthru
          _
      $region12: #{tpu_custom_call.1} parent=5 // pred_fallthru
        _
      %p146 = scmp.lt.s32.totalorder %s13, 2
      // Predicated region
      $region17: #{tpu_custom_call.1} parent=5 // pred_check
        %p147 = pneg %p146
      $region18: #{tpu_custom_call.1} parent=5 // pred_check_branch
        %149 = sbr.rel (%p147) target = $region20
      $region19: #{tpu_custom_call.1} parent=5 // pred_region
        // Predicated region
        $region21: #{tpu_custom_call.1} parent=19 // pred_check
          %p150 = pneg %p68
        $region22: #{tpu_custom_call.1} parent=19 // pred_check_branch
          %152 = sbr.rel (%p150) target = $region24
        $region23: #{tpu_custom_call.1} parent=19 // pred_region
          %s153 = sadd.s32 %s20, %s21
          %s154 = smul.u32 7, %s153
          %p155 = scmp.lt.s32.totalorder %s154, 13
          %s156 = scalar_select %p155, %s154, 13
          %s157 = smul.addr %s156, 8
          %s158 = scalar_lea.vmem %s1, %s157
          %s159 = sadd.s32 %s20, %s21
          %s160 = smul.u32 7, %s159
        $region24: #{tpu_custom_call.1} parent=19 // pred_fallthru
          _
        // Predicated region
        $region25: #{tpu_custom_call.1} parent=19 // pred_check
          %p161 = pneg %p96
        $region26: #{tpu_custom_call.1} parent=19 // pred_check_branch
          %163 = sbr.rel (%p161) target = $region28
        $region27: #{tpu_custom_call.1} parent=19 // pred_region
          %s164 = sadd.s32 %s20, %s21
          %s165 = smul.u32 7, %s164
          %p166 = scmp.lt.s32.totalorder %s165, 13
          %s167 = scalar_select %p166, %s165, 13
          %s168 = smul.addr %s167, 8
          %s169 = scalar_lea.vmem %s2, %s168
          %s170 = sadd.s32 %s20, %s21
          %s171 = smul.u32 7, %s170
        $region28: #{tpu_custom_call.1} parent=19 // pred_fallthru
          _
      $region20: #{tpu_custom_call.1} parent=5 // pred_fallthru
        _
      %p172 = scmp.le.s32.totalorder 1, %s13
      %p173 = scmp.lt.s32.totalorder %s13, 3
      %p174 = pnand %p172, %p173
      %p175 = pneg %p174
      // Predicated region
      $region29: #{tpu_custom_call.1} parent=5 // pred_check
        _
      $region30: #{tpu_custom_call.1} parent=5 // pred_check_branch
        %177 = sbr.rel (%p174) target = $region32
      $region31: #{tpu_custom_call.1} parent=5 // pred_region
        %s178 = ssub.s32 %s13, 1
        %p179 = pneg %p46
        %p180 = pneg %p43
        %s181 = sadd.s32 %s22, %s23
        %s182 = smul.u32 7, %s181
        %p183 = scmp.lt.s32.totalorder %s182, 13
        %s184 = scalar_select %p183, %s182, 13
        %s185 = smul.addr %s184, 8
        %s186 = scalar_lea.vmem %s1, %s185
        %p187 = pneg %p74
        %p188 = pneg %p71
        %s189 = sadd.s32 %s22, %s23
        %s190 = smul.u32 7, %s189
        %p191 = scmp.lt.s32.totalorder %s190, 13
        %s192 = scalar_select %p191, %s190, 13
        %s193 = smul.addr %s192, 8
        %s194 = scalar_lea.vmem %s2, %s193
        %p195 = pneg %p102
        %p196 = pneg %p99
        %p197 = pneg %p128
        %p198 = pneg %p125
        %s199 = sand.u32 %s115, 1
        %s200 = scalar_lea.sflag [#allocation5], %s199
        %s201 = sand.u32 %s115, 1
        %s202 = smul.addr %s201, 8
        %s203 = scalar_lea.vmem [#allocation4], %s202
        %s204 = sadd.s32 %s22, %s23
        %s205 = smul.u32 7, %s204
        %p206 = scmp.lt.s32.totalorder %s205, 13
        %s207 = scalar_select %p206, %s205, 13
        %s208 = smul.addr %s207, 8
        %s209 = scalar_lea.vmem %s1, %s208
        %s210 = sadd.s32 %s22, %s23
        %s211 = smul.u32 7, %s210
        %s212 = sadd.s32 %s22, %s23
        %s213 = smul.u32 7, %s212
        %p214 = scmp.lt.s32.totalorder %s213, 13
        %s215 = scalar_select %p214, %s213, 13
        %s216 = smul.addr %s215, 8
        %s217 = scalar_lea.vmem %s2, %s216
        %s218 = sadd.s32 %s22, %s23
        %s219 = smul.u32 7, %s218
        %p220 = scmp.eq.s32.totalorder %s23, 0
        // Predicated region
        $region33: #{tpu_custom_call.1} parent=31 // pred_check
          %p221 = pneg %p220
        $region34: #{tpu_custom_call.1} parent=31 // pred_check_branch
          %223 = sbr.rel (%p221) target = $region36
        $region35: #{tpu_custom_call.1} parent=31 // pred_region
          %vm224 = vcmask 7168
          %225 = vst.msk [vmem:[#allocation2] sm:$0xff] %vm224, 0.0
          %226 = vst.msk [vmem:[#allocation2 + $0x8] sm:$0xff] %vm224, 0.0
          %227 = vst.msk [vmem:[#allocation2 + $0x10] sm:$0xff] %vm224, 0.0
          %228 = vst.msk [vmem:[#allocation2 + $0x18] sm:$0xff] %vm224, 0.0
          %229 = vst.msk [vmem:[#allocation2 + $0x20] sm:$0xff] %vm224, 0.0
          %230 = vst.msk [vmem:[#allocation2 + $0x28] sm:$0xff] %vm224, 0.0
          %231 = vst.msk [vmem:[#allocation2 + $0x30] sm:$0xff] %vm224, 0.0
        $region36: #{tpu_custom_call.1} parent=31 // pred_fallthru
          _
        %v232 = vld [vmem:[%s209] sm:$0xff]
        %v233 = vld [vmem:[%s209 + $0x8] sm:$0xff]
        %v234 = vld [vmem:[%s209 + $0x10] sm:$0xff]
        %v235 = vld [vmem:[%s209 + $0x18] sm:$0xff]
        %v236 = vld [vmem:[%s209 + $0x20] sm:$0xff]
        %v237 = vld [vmem:[%s209 + $0x28] sm:$0xff]
        %v238 = vld [vmem:[%s209 + $0x30] sm:$0xff]
        %v239 = vld [vmem:[%s217] sm:$0xff]
        %v240 = vld [vmem:[%s217 + $0x8] sm:$0xff]
        %v241 = vld [vmem:[%s217 + $0x10] sm:$0xff]
        %v242 = vld [vmem:[%s217 + $0x18] sm:$0xff]
        %v243 = vld [vmem:[%s217 + $0x20] sm:$0xff]
        %v244 = vld [vmem:[%s217 + $0x28] sm:$0xff]
        %v245 = vld [vmem:[%s217 + $0x30] sm:$0xff]
        %v246 = vlaneseq
        %v247 = vand.u32 %v246, 127
        %248 = vset.pattern.permute.xlu0 0
        %249 = vperm.xlu0 %248, %v239
        %v250 = vpop.permute.xlu0 %249
        %251 = vset.pattern.permute.xlu0 0
        %252 = vperm.xlu0 %251, %v240
        %v253 = vpop.permute.xlu0 %252
        %254 = vset.pattern.permute.xlu0 0
        %255 = vperm.xlu0 %254, %v241
        %v256 = vpop.permute.xlu0 %255
        %257 = vset.pattern.permute.xlu0 0
        %258 = vperm.xlu0 %257, %v242
        %v259 = vpop.permute.xlu0 %258
        %260 = vset.pattern.permute.xlu0 0
        %261 = vperm.xlu0 %260, %v243
        %v262 = vpop.permute.xlu0 %261
        %263 = vset.pattern.permute.xlu0 0
        %264 = vperm.xlu0 %263, %v244
        %v265 = vpop.permute.xlu0 %264
        %266 = vset.pattern.permute.xlu0 0
        %267 = vperm.xlu0 %266, %v245
        %v268 = vpop.permute.xlu0 %267
        %vm269 = vcmp.eq.s32.totalorder %v247, %v250
        %vm270 = vcmp.eq.s32.totalorder %v247, %v253
        %vm271 = vcmp.eq.s32.totalorder %v247, %v256
        %vm272 = vcmp.eq.s32.totalorder %v247, %v259
        %vm273 = vcmp.eq.s32.totalorder %v247, %v262
        %vm274 = vcmp.eq.s32.totalorder %v247, %v265
        %vm275 = vcmp.eq.s32.totalorder %v247, %v268
        %v276 = vsel %vm269, %v232, 0.0
        %v277 = vsel %vm270, %v233, 0.0
        %v278 = vsel %vm271, %v234, 0.0
        %v279 = vsel %vm272, %v235, 0.0
        %v280 = vsel %vm273, %v236, 0.0
        %v281 = vsel %vm274, %v237, 0.0
        %v282 = vsel %vm275, %v238, 0.0
        %vm283 = vcmask 261120
        %v284 = vsel %vm283, %v276, 0.0
        %285 = vadd.xlane.f32.xlu0 %v284
        %v286 = vpop.xlane.xlu0 %285
        %v287 = vsel %vm283, %v277, 0.0
        %288 = vadd.xlane.f32.xlu0 %v287
        %v289 = vpop.xlane.xlu0 %288
        %v290 = vsel %vm283, %v278, 0.0
        %291 = vadd.xlane.f32.xlu0 %v290
        %v292 = vpop.xlane.xlu0 %291
        %v293 = vsel %vm283, %v279, 0.0
        %294 = vadd.xlane.f32.xlu0 %v293
        %v295 = vpop.xlane.xlu0 %294
        %v296 = vsel %vm283, %v280, 0.0
        %297 = vadd.xlane.f32.xlu0 %v296
        %v298 = vpop.xlane.xlu0 %297
        %v299 = vsel %vm283, %v281, 0.0
        %300 = vadd.xlane.f32.xlu0 %v299
        %v301 = vpop.xlane.xlu0 %300
        %v302 = vsel %vm283, %v282, 0.0
        %303 = vadd.xlane.f32.xlu0 %v302
        %v304 = vpop.xlane.xlu0 %303
        %v305 = vsel %vm283, %v232, -inf
        %306 = vmax.xlane.f32.xlu0 %v305
        %v307 = vpop.xlane.xlu0 %306
        %v308 = vsel %vm283, %v233, -inf
        %309 = vmax.xlane.f32.xlu0 %v308
        %v310 = vpop.xlane.xlu0 %309
        %v311 = vsel %vm283, %v234, -inf
        %312 = vmax.xlane.f32.xlu0 %v311
        %v313 = vpop.xlane.xlu0 %312
        %v314 = vsel %vm283, %v235, -inf
        %315 = vmax.xlane.f32.xlu0 %v314
        %v316 = vpop.xlane.xlu0 %315
        %v317 = vsel %vm283, %v236, -inf
        %318 = vmax.xlane.f32.xlu0 %v317
        %v319 = vpop.xlane.xlu0 %318
        %v320 = vsel %vm283, %v237, -inf
        %321 = vmax.xlane.f32.xlu0 %v320
        %v322 = vpop.xlane.xlu0 %321
        %v323 = vsel %vm283, %v238, -inf
        %324 = vmax.xlane.f32.xlu0 %v323
        %v325 = vpop.xlane.xlu0 %324
        %v326 = vsub.f32 %v232, %v307
        %v327 = vsub.f32 %v233, %v310
        %v328 = vsub.f32 %v234, %v313
        %v329 = vsub.f32 %v235, %v316
        %v330 = vsub.f32 %v236, %v319
        %v331 = vsub.f32 %v237, %v322
        %v332 = vsub.f32 %v238, %v325
        %v333 = vmul.f32 %v326, 1.442695
        %v334 = vpow.pop %v333
        %v335 = vmul.f32 %v327, 1.442695
        %v336 = vpow.pop %v335
        %v337 = vmul.f32 %v328, 1.442695
        %v338 = vpow.pop %v337
        %v339 = vmul.f32 %v329, 1.442695
        %v340 = vpow.pop %v339
        %v341 = vmul.f32 %v330, 1.442695
        %v342 = vpow.pop %v341
        %v343 = vmul.f32 %v331, 1.442695
        %v344 = vpow.pop %v343
        %v345 = vmul.f32 %v332, 1.442695
        %v346 = vpow.pop %v345
        %v347 = vsel %vm283, %v334, 0.0
        %348 = vadd.xlane.f32.xlu0 %v347
        %v349 = vpop.xlane.xlu0 %348
        %v350 = vsel %vm283, %v336, 0.0
        %351 = vadd.xlane.f32.xlu0 %v350
        %v352 = vpop.xlane.xlu0 %351
        %v353 = vsel %vm283, %v338, 0.0
        %354 = vadd.xlane.f32.xlu0 %v353
        %v355 = vpop.xlane.xlu0 %354
        %v356 = vsel %vm283, %v340, 0.0
        %357 = vadd.xlane.f32.xlu0 %v356
        %v358 = vpop.xlane.xlu0 %357
        %v359 = vsel %vm283, %v342, 0.0
        %360 = vadd.xlane.f32.xlu0 %v359
        %v361 = vpop.xlane.xlu0 %360
        %v362 = vsel %vm283, %v344, 0.0
        %363 = vadd.xlane.f32.xlu0 %v362
        %v364 = vpop.xlane.xlu0 %363
        %v365 = vsel %vm283, %v346, 0.0
        %366 = vadd.xlane.f32.xlu0 %v365
        %v367 = vpop.xlane.xlu0 %366
        %v368 = vlog2.pop %v349
        %v369 = vmul.f32 %v368, 0.6931472
        %v370 = vlog2.pop %v352
        %v371 = vmul.f32 %v370, 0.6931472
        %v372 = vlog2.pop %v355
        %v373 = vmul.f32 %v372, 0.6931472
        %v374 = vlog2.pop %v358
        %v375 = vmul.f32 %v374, 0.6931472
        %v376 = vlog2.pop %v361
        %v377 = vmul.f32 %v376, 0.6931472
        %v378 = vlog2.pop %v364
        %v379 = vmul.f32 %v378, 0.6931472
        %v380 = vlog2.pop %v367
        %v381 = vmul.f32 %v380, 0.6931472
        %v382 = vadd.f32 %v307, %v369
        %v383 = vadd.f32 %v310, %v371
        %v384 = vadd.f32 %v313, %v373
        %v385 = vadd.f32 %v316, %v375
        %v386 = vadd.f32 %v319, %v377
        %v387 = vadd.f32 %v322, %v379
        %v388 = vadd.f32 %v325, %v381
        %v389 = vsub.f32 %v382, %v286
        %v390 = vsub.f32 %v383, %v289
        %v391 = vsub.f32 %v384, %v292
        %v392 = vsub.f32 %v385, %v295
        %v393 = vsub.f32 %v386, %v298
        %v394 = vsub.f32 %v387, %v301
        %v395 = vsub.f32 %v388, %v304
        %s396 = sld [smem:[#allocation3]]
        %v397 = vstv %s396
        %v398 = vsub.f32 %v389, %v397
        %v399 = vsub.f32 %v390, %v397
        %v400 = vsub.f32 %v391, %v397
        %v401 = vsub.f32 %v392, %v397
        %v402 = vsub.f32 %v393, %v397
        %v403 = vsub.f32 %v394, %v397
        %v404 = vsub.f32 %v395, %v397
        %v405 = vmax.f32 %v398, 0.0
        %v406 = vmax.f32 %v399, 0.0
        %v407 = vmax.f32 %v400, 0.0
        %v408 = vmax.f32 %v401, 0.0
        %v409 = vmax.f32 %v402, 0.0
        %v410 = vmax.f32 %v403, 0.0
        %v411 = vmax.f32 %v404, 0.0
        %vm412 = vcmp.ge.s32.totalorder %v239, 0
        %vm413 = vcmp.ge.s32.totalorder %v240, 0
        %vm414 = vcmp.ge.s32.totalorder %v241, 0
        %vm415 = vcmp.ge.s32.totalorder %v242, 0
        %vm416 = vcmp.ge.s32.totalorder %v243, 0
        %vm417 = vcmp.ge.s32.totalorder %v244, 0
        %vm418 = vcmp.ge.s32.totalorder %v245, 0
        %v419 = vld [vmem:[#allocation2] sm:$0xff]
        %v420 = vld [vmem:[#allocation2 + $0x8] sm:$0xff]
        %v421 = vld [vmem:[#allocation2 + $0x10] sm:$0xff]
        %v422 = vld [vmem:[#allocation2 + $0x18] sm:$0xff]
        %v423 = vld [vmem:[#allocation2 + $0x20] sm:$0xff]
        %v424 = vld [vmem:[#allocation2 + $0x28] sm:$0xff]
        %v425 = vld [vmem:[#allocation2 + $0x30] sm:$0xff]
        %v426 = vsel %vm412, %v405, 0.0
        %v427 = vsel %vm413, %v406, 0.0
        %v428 = vsel %vm414, %v407, 0.0
        %v429 = vsel %vm415, %v408, 0.0
        %v430 = vsel %vm416, %v409, 0.0
        %v431 = vsel %vm417, %v410, 0.0
        %v432 = vsel %vm418, %v411, 0.0
        %v433 = vadd.f32 %v419, %v426
        %v434 = vadd.f32 %v420, %v427
        %v435 = vadd.f32 %v421, %v428
        %v436 = vadd.f32 %v422, %v429
        %v437 = vadd.f32 %v423, %v430
        %v438 = vadd.f32 %v424, %v431
        %v439 = vadd.f32 %v425, %v432
        %vm440 = vcmask 7168
        %441 = vst.msk [vmem:[#allocation2] sm:$0xff] %vm440, %v433
        %442 = vst.msk [vmem:[#allocation2 + $0x8] sm:$0xff] %vm440, %v434
        %443 = vst.msk [vmem:[#allocation2 + $0x10] sm:$0xff] %vm440, %v435
        %444 = vst.msk [vmem:[#allocation2 + $0x18] sm:$0xff] %vm440, %v436
        %445 = vst.msk [vmem:[#allocation2 + $0x20] sm:$0xff] %vm440, %v437
        %446 = vst.msk [vmem:[#allocation2 + $0x28] sm:$0xff] %vm440, %v438
        %447 = vst.msk [vmem:[#allocation2 + $0x30] sm:$0xff] %vm440, %v439
        // Predicated region
        $region37: #{tpu_custom_call.1} parent=31 // pred_check
          %p448 = pneg %p220
        $region38: #{tpu_custom_call.1} parent=31 // pred_check_branch
          %450 = sbr.rel (%p448) target = $region40
        $region39: #{tpu_custom_call.1} parent=31 // pred_region
          %v451 = vld [vmem:[#allocation2] sm:$0xff]
          %v452 = vld [vmem:[#allocation2 + $0x8] sm:$0xff]
          %v453 = vld [vmem:[#allocation2 + $0x10] sm:$0xff]
          %v454 = vld [vmem:[#allocation2 + $0x18] sm:$0xff]
          %v455 = vld [vmem:[#allocation2 + $0x20] sm:$0xff]
          %v456 = vld [vmem:[#allocation2 + $0x28] sm:$0xff]
          %v457 = vld [vmem:[#allocation2 + $0x30] sm:$0xff]
          %v458 = vsel %vm440, %v451, 0.0
          %v459 = vsel %vm440, %v452, 0.0
          %v460 = vadd.f32 %v458, %v459
          %v461 = vsel %vm440, %v453, 0.0
          %v462 = vadd.f32 %v460, %v461
          %v463 = vsel %vm440, %v454, 0.0
          %v464 = vadd.f32 %v462, %v463
          %v465 = vsel %vm440, %v455, 0.0
          %v466 = vadd.f32 %v464, %v465
          %v467 = vsel %vm440, %v456, 0.0
          %v468 = vadd.f32 %v466, %v467
          %v469 = vsel %vm440, %v457, 0.0
          %v470 = vadd.f32 %v468, %v469
          %471 = vadd.xlane.f32.xlu0 %v470
          %v472 = vpop.xlane.xlu0 %471
          %v473 = vrot.slane %v472, 4
          %v474 = vadd.f32 %v472, %v473
          %v475 = vrot.slane %v474, 2
          %v476 = vadd.f32 %v474, %v475
          %v477 = vrot.slane %v476, 1
          %v478 = vadd.f32 %v476, %v477
          %s479 = vtos %v478
          %v480 = vlaneseq
          %v481 = vshrl.u32 %v480, 7
          %vm482 = vcmp.eq.s32.totalorder %v247, 0
          %vm483 = vcmp.eq.s32.totalorder %v481, 0
          %vm484 = vmand %vm482, %vm483
          %v485 = vstv %s479
          %v486 = vsel %vm484, %v485, 0.0
          %487 = vst [vmem:[%s203] sm:$0xff] %v486
        $region40: #{tpu_custom_call.1} parent=31 // pred_fallthru
          _
        %s488 = sand.u32 %s115, 1
        %s489 = scalar_lea.sflag [#allocation5], %s488
        %s490 = sand.u32 %s115, 1
        %s491 = smul.addr %s490, 8
        %s492 = scalar_lea.vmem [#allocation4], %s491
        // Predicated region
        $region41: #{tpu_custom_call.1} parent=31 // pred_check
          %p493 = pneg %p125
        $region42: #{tpu_custom_call.1} parent=31 // pred_check_branch
          %495 = sbr.rel (%p493) target = $region44
        $region43: #{tpu_custom_call.1} parent=31 // pred_region
          %s497 = ssub.s32 128, 128
          %498 = vsyncadd %s489, %s497
          %s499 = smul.addr %s22, 128
          %s500 = scalar_lea.hbm %s3, %s499
          %s502 = sshll.u32 %s492, 4
          %s503 = int_to_ptr.vmem [resolvable:$true] %s502
          %505 = dma.vmem_to_hbm [thread:$0]  %s503, 128, %s500, %s489
        $region44: #{tpu_custom_call.1} parent=31 // pred_fallthru
          _
      $region32: #{tpu_custom_call.1} parent=5 // pred_fallthru
        _
      %p506 = scmp.le.s32.totalorder 2, %s13
      // Predicated region
      $region45: #{tpu_custom_call.1} parent=5 // pred_check
        %p507 = pneg %p506
      $region46: #{tpu_custom_call.1} parent=5 // pred_check_branch
        %509 = sbr.rel (%p507) target = $region48
      $region47: #{tpu_custom_call.1} parent=5 // pred_region
        %s510 = ssub.s32 %s13, 2
        // Predicated region
        $region49: #{tpu_custom_call.1} parent=47 // pred_check
          %p511 = pneg %p131
        $region50: #{tpu_custom_call.1} parent=47 // pred_check_branch
          %513 = sbr.rel (%p511) target = $region52
        $region51: #{tpu_custom_call.1} parent=47 // pred_region
          %s514 = sand.u32 %s116, 1
          %s515 = scalar_lea.sflag [#allocation5], %s514
          %s516 = sand.u32 %s116, 1
          %s517 = smul.addr %s516, 8
          %s518 = scalar_lea.vmem [#allocation4], %s517
          %519 = dma.done %s515, 128
        $region52: #{tpu_custom_call.1} parent=47 // pred_fallthru
          _
      $region48: #{tpu_custom_call.1} parent=5 // pred_fallthru
        _
    $region6: #{tpu_custom_call.1} parent=1 // loop_footer
      %s17 = sadd.s32 1, %s13
    $region7: #{tpu_custom_call.1} parent=1 // loop_footer_branch
      %12 = sbr.rel target = $region3
    $region8: #{tpu_custom_call.1} parent=1 // loop_exit
      _
    %520 = vsyncpa [#allocation5], 1
    %s521 = scalar_lea.sflag [#allocation5], 1
    %522 = vsyncpa %s521, 1

</llo_original>
